<compile_context>
chip_gen: v6e
topology: v6e:2x2x1
jax: 0.10.0
libtpu: 0.0.40
codegen_flags: <defaults>
</compile_context>

<pallas_src>
import functools

import jax
import jax.numpy as jnp
from jax import lax
from jax.experimental import pallas as pl
from jax.experimental.pallas import tpu as pltpu


_LANE_CHUNK = 512  # lanes per inner compute step; keeps softmax temps in vregs


def _sublane_multiple(itemsize):
    # Native VMEM tile heights: f32 -> 8, bf16 -> 16, int8 -> 32 sublanes.
    return 8 * max(1, 4 // itemsize)


def _padded_rows(rows, itemsize):
    m = _sublane_multiple(itemsize)
    return ((rows + m - 1) // m) * m


def _choose_tile_hw(hw, c, logit_itemsize, tgt_itemsize,
                    chunk=_LANE_CHUNK, input_vmem_budget=24 * 1024 * 1024):
    """Largest chunk-multiple pixel tile whose *padded*, double-buffered input
    footprint (logits block + target row block) stays inside the budget."""
    per_pixel = (_padded_rows(c, logit_itemsize) * logit_itemsize
                 + _padded_rows(1, tgt_itemsize) * tgt_itemsize)
    tile = input_vmem_budget // (2 * max(1, per_pixel))   # x2: double buffering
    tile = max((tile // chunk) * chunk, chunk)
    if tile >= hw:
        return hw        # single full-extent tile (no (8,128) constraint issue)
    return tile


def _tversky_ce_kernel(x_ref, t_ref, o_ref, *, hw_total, tile_hw,
                       tiles_per_split, full_tiles, need_mask):
    s_idx = pl.program_id(0)           # pixel-range split (v7x 2-core use)
    j = pl.program_id(2)               # pixel tile within the split

    @pl.when(j == 0)
    def _():
        o_ref[...] = jnp.zeros_like(o_ref)

    c = x_ref.shape[1]
    width = x_ref.shape[2]
    csz = width if width < _LANE_CHUNK else _LANE_CHUNK
    n_full = width // csz
    rem = width % csz

    global_tile = s_idx * tiles_per_split + j
    tile_base = global_tile * tile_hw          # first global pixel of this tile

    def chunk_stats(off, w, masked):
        """Partial sums over a (c, w) lane chunk starting at lane `off`."""
        x = x_ref[0, :, pl.ds(off, w)].astype(jnp.float32)    # (c, w)
        tgt = t_ref[0, :, pl.ds(off, w)].astype(jnp.int32)    # (1, w)
        if masked:
            col = tile_base + off + lax.broadcasted_iota(jnp.int32, (1, w), 1)
            valid = col < hw_total
            x = jnp.where(valid, x, 0.0)      # neutralize padding before max/exp

        # Softmax over the class (sublane) axis; row reciprocal instead of a
        # (c, w) divide, and no materialized (c, w) log-softmax.
        m = jnp.max(x, axis=0, keepdims=True)            # (1, w)
        shifted = x - m
        e = jnp.exp(shifted)
        s = jnp.sum(e, axis=0, keepdims=True)            # (1, w)
        inv_s = 1.0 / s                                   # w divides, not c*w
        log_s = jnp.log(s)                                # (1, w)
        p = e * inv_s                                     # (c, w)

        cls = lax.broadcasted_iota(jnp.int32, (c, w), 0)
        oh = cls == tgt
        if masked:
            oh = jnp.logical_and(oh, valid)
        onehot = oh.astype(jnp.float32)                   # (c, w)

        prod = p * onehot                                 # p * t
        shifted_t = jnp.sum(shifted * onehot, axis=0, keepdims=True)  # (1, w)
        if masked:
            p = jnp.where(valid, p, 0.0)
            log_s = jnp.where(valid, log_s, 0.0)

        tp = jnp.sum(prod, axis=1, keepdims=True)         # (c, 1)  sum p*t
        cnt = jnp.sum(onehot, axis=1, keepdims=True)      # (c, 1)  sum t
        sp = jnp.sum(p, axis=1, keepdims=True)            # (c, 1)  sum p
        ce = jnp.sum(log_s - shifted_t, axis=1, keepdims=True)  # (1, 1) CE sum
        return tp, cnt, sp, ce

    def process(masked):
        zc = jnp.zeros((c, 1), jnp.float32)
        z1 = jnp.zeros((1, 1), jnp.float32)

        def add(carry, parts):
            return tuple(a + b for a, b in zip(carry, parts))

        carry = (zc, zc, zc, z1)
        if n_full == 1:
            carry = add(carry, chunk_stats(0, csz, masked))
        else:
            def body(i, cy):
                off = (pl.multiple_of(i * csz, 128)
                       if csz % 128 == 0 else i * csz)
                return add(cy, chunk_stats(off, csz, masked))
            carry = lax.fori_loop(0, n_full, body, carry)
        if rem:
            carry = add(carry, chunk_stats(n_full * csz, rem, masked))

        tp, cnt, sp, ce = carry
        # Merge into a single (c, 4) block and do ONE accumulator RMW per step.
        col = lax.broadcasted_iota(jnp.int32, (c, 4), 1)
        row = lax.broadcasted_iota(jnp.int32, (c, 4), 0)
        stats = (jnp.where(col == 0, tp, 0.0)
                 + jnp.where(col == 1, cnt, 0.0)
                 + jnp.where(col == 2, sp, 0.0)
                 + jnp.where(jnp.logical_and(col == 3, row == 0), ce, 0.0))
        o_ref[0, 0, :, :] += stats

    if need_mask:
        @pl.when(global_tile < full_tiles)
        def _():
            process(False)           # interior tiles: fast, unmasked path

        @pl.when(global_tile >= full_tiles)
        def _():
            process(True)            # partial / split-padding tiles
    else:
        process(False)


def tversky_focal_ce_loss(
    predict_nchw,
    target_nhw,
    *,
    tversky_weight=0.5,
    tversky_smooth=1.0,
    tversky_alpha=0.7,
    tversky_gamma=0.9,
):
    """predict_nchw: [N, C, H, W] logits (any float dtype), target_nhw: [N, H, W] ints."""
    n, c, h, w = predict_nchw.shape
    hw = h * w
    p_total = n * hw

    # Free reshapes only: no transpose, no pad, no dtype cast in the wrapper.
    logits = predict_nchw.reshape(n, c, hw)
    targets = target_nhw.reshape(n, 1, hw)
    if not jnp.issubdtype(targets.dtype, jnp.integer):
        targets = targets.astype(jnp.int32)

    tile_hw = _choose_tile_hw(hw, c,
                              jnp.dtype(logits.dtype).itemsize,
                              jnp.dtype(targets.dtype).itemsize)
    total_tiles = pl.cdiv(hw, tile_hw)
    # Leading "parallel" axis splits the tile range across the 2 TensorCores
    # of a v7x chip; degenerates to size 1 when there is a single tile.
    nsplit = 2 if total_tiles >= 2 else 1
    tiles_per_split = pl.cdiv(total_tiles, nsplit)
    padded_tiles = nsplit * tiles_per_split
    full_tiles = hw // tile_hw
    need_mask = (padded_tiles * tile_hw) != hw
    last_tile = total_tiles - 1

    if padded_tiles > total_tiles:
        # Clamp so the block index never runs past the array; OOB split-padding
        # steps are fully masked inside the kernel.
        def pix_map(s, b, j):
            return (b, 0, jnp.minimum(s * tiles_per_split + j, last_tile))
    else:
        def pix_map(s, b, j):
            return (b, 0, s * tiles_per_split + j)

    kernel = functools.partial(
        _tversky_ce_kernel, hw_total=hw, tile_hw=tile_hw,
        tiles_per_split=tiles_per_split, full_tiles=full_tiles,
        need_mask=need_mask)

    stats = pl.pallas_call(
        kernel,
        out_shape=jax.ShapeDtypeStruct((nsplit, n, c, 4), jnp.float32),
        grid_spec=pltpu.PrefetchScalarGridSpec(
            num_scalar_prefetch=0,
            grid=(nsplit, n, tiles_per_split),
            in_specs=[
                pl.BlockSpec((1, c, tile_hw), pix_map),
                pl.BlockSpec((1, 1, tile_hw), pix_map),
            ],
            out_specs=pl.BlockSpec((1, 1, c, 4), lambda s, b, j: (s, b, 0, 0)),
        ),
        compiler_params=pltpu.CompilerParams(
            dimension_semantics=("parallel", "parallel", "arbitrary"),
            vmem_limit_bytes=48 * 1024 * 1024,
        ),
    )(logits, targets)

    per_class = jnp.sum(stats, axis=(0, 1))    # (C, 4) summed over split & batch
    tp = per_class[:, 0]
    cnt = per_class[:, 1]
    sp = per_class[:, 2]
    ce_sum = jnp.sum(per_class[:, 3])

    # --- Tversky focal loss (weight = 1/C per class, ignore_index < 0) ---
    # TODO(synk): explicit class weights / ignore_index >= 0 are not supported.
    fn = cnt - tp                               # sum((1-p)*t)
    fp = sp - tp                                # sum(p*(1-t))
    alpha = tversky_alpha
    beta = 1.0 - alpha
    num = tp + tversky_smooth
    den = tp + alpha * fn + beta * fp + tversky_smooth
    per_class_tversky = jnp.power(1.0 - num / den, 1.0 / tversky_gamma)
    tversky_loss = jnp.sum(per_class_tversky) / c

    # --- Cross entropy (mean over all pixels, no ignored class) ---
    ce_loss = ce_sum / p_total

    return tversky_weight * tversky_loss + (1.0 - tversky_weight) * ce_loss


def _reference_loss(predict_nchw, target_nhw,
                    tversky_weight=0.5, smooth=1.0, alpha=0.7, gamma=0.9):
    n, c, h, w = predict_nchw.shape
    logits = jnp.transpose(predict_nchw, (0, 2, 3, 1)).reshape(-1, c).astype(jnp.float32)
    tgt = target_nhw.reshape(-1)
    probs = jax.nn.softmax(logits, axis=-1)
    onehot = jax.nn.one_hot(tgt, c, dtype=jnp.float32)
    total = 0.0
    for i in range(c):
        p_i, t_i = probs[:, i], onehot[:, i]
        num = jnp.sum(p_i * t_i) + smooth
        den = (jnp.sum(p_i * t_i) + alpha * jnp.sum((1 - p_i) * t_i)
               + (1 - alpha) * jnp.sum(p_i * (1 - t_i)) + smooth)
        total = total + (1.0 / c) * jnp.power(1.0 - num / den, 1.0 / gamma)
    logp = jax.nn.log_softmax(logits, axis=-1)
    ce = -jnp.mean(jnp.sum(logp * onehot, axis=-1))
    return tversky_weight * total + (1.0 - tversky_weight) * ce


if __name__ == "__main__":
    key = jax.random.PRNGKey(0)
    k1, k2 = jax.random.split(key)
    N, C, H, W = 2, 4, 16, 16
    predict = jax.random.normal(k1, (N, C, H, W), dtype=jnp.float32)
    target = jax.random.randint(k2, (N, H, W), 0, C, dtype=jnp.int32)

    loss = tversky_focal_ce_loss(predict, target)
    loss = jax.block_until_ready(loss)

    ref = jax.block_until_ready(_reference_loss(predict, target))
    assert jnp.allclose(loss, ref, rtol=1e-5, atol=1e-5), (loss, ref)

    print("KERNEL_OK")
</pallas_src>

<mosaic_0001>
module attributes {stable_mosaic.version = 11 : i64} {
  func.func @_tversky_ce_kernel(%arg0: i32, %arg1: i32, %arg2: i32, %arg3: memref<1x4x256xf32, #tpu.memory_space<vmem>>, %arg4: memref<1x1x256xi32, #tpu.memory_space<vmem>>, %arg5: memref<1x1x4x4xf32, #tpu.memory_space<vmem>>) attributes {dimension_semantics = [#tpu.dimension_semantics<parallel>, #tpu.dimension_semantics<parallel>, #tpu.dimension_semantics<arbitrary>], iteration_bounds = array<i64: 1, 2, 1>, scalar_prefetch = 0 : i64, scratch_operands = 0 : i64, tpu.core_type = #tpu.core_type<tc>, window_params = [{transform_indices = @transform_0, window_bounds = array<i64: 1, 4, 256>}, {transform_indices = @transform_1, window_bounds = array<i64: 1, 1, 256>}, {transform_indices = @transform_2, window_bounds = array<i64: 1, 1, 4, 4>}]} {
    %c0_i32 = arith.constant 0 : i32
    %0 = arith.cmpi eq, %arg2, %c0_i32 : i32
    %1 = arith.extui %0 : i1 to i32
    %c0_i32_0 = arith.constant 0 : i32
    %2 = arith.cmpi ne, %1, %c0_i32_0 : i32
    scf.if %2 {
      %cst_29 = arith.constant 0.000000e+00 : f32
      %81 = vector.broadcast %cst_29 : f32 to vector<1x1x4x4xf32>
      %c0_30 = arith.constant 0 : index
      %c0_31 = arith.constant 0 : index
      %c0_32 = arith.constant 0 : index
      %c0_33 = arith.constant 0 : index
      %82 = vector.load %arg5[%c0_30, %c0_31, %c0_32, %c0_33] : memref<1x1x4x4xf32, #tpu.memory_space<vmem>>, vector<1x1x4x4xf32>
      tpu.vector_store %arg5[%c0_30, %c0_31, %c0_32, %c0_33], %81 {strides = array<i32>} : memref<1x1x4x4xf32, #tpu.memory_space<vmem>>, vector<1x1x4x4xf32>,
    } else {
    }
    %cst = arith.constant 0.000000e+00 : f32
    %3 = vector.broadcast %cst : f32 to vector<4x1xf32>
    %cst_1 = arith.constant 0.000000e+00 : f32
    %4 = vector.broadcast %cst_1 : f32 to vector<1x1xf32>
    %c0 = arith.constant 0 : index
    %c0_2 = arith.constant 0 : index
    %c0_3 = arith.constant 0 : index
    %5 = vector.load %arg3[%c0, %c0_2, %c0_3] : memref<1x4x256xf32, #tpu.memory_space<vmem>>, vector<1x4x256xf32>
    %6 = vector.shape_cast %5 : vector<1x4x256xf32> to vector<4x256xf32>
    %c0_4 = arith.constant 0 : index
    %c0_5 = arith.constant 0 : index
    %c0_6 = arith.constant 0 : index
    %7 = vector.load %arg4[%c0_4, %c0_5, %c0_6] : memref<1x1x256xi32, #tpu.memory_space<vmem>>, vector<1x1x256xi32>
    %8 = vector.shape_cast %7 : vector<1x1x256xi32> to vector<1x256xi32>
    %cst_7 = arith.constant dense<0xFF800000> : vector<256xf32>
    %9 = vector.multi_reduction <maximumf>, %6, %cst_7 [0] : vector<4x256xf32> to vector<256xf32>
    %10 = vector.shape_cast %9 : vector<256xf32> to vector<1x256xf32>
    %11 = vector.broadcast %10 : vector<1x256xf32> to vector<4x256xf32>
    %12 = arith.subf %6, %11 : vector<4x256xf32>
    %13 = math.exp %12 : vector<4x256xf32>
    %cst_8 = arith.constant dense<0.000000e+00> : vector<256xf32>
    %14 = vector.multi_reduction <add>, %13, %cst_8 [0] : vector<4x256xf32> to vector<256xf32>
    %15 = vector.shape_cast %14 : vector<256xf32> to vector<1x256xf32>
    %cst_9 = arith.constant 1.000000e+00 : f32
    %16 = vector.broadcast %cst_9 : f32 to vector<1x256xf32>
    %17 = arith.divf %16, %15 : vector<1x256xf32>
    %18 = math.log %15 : vector<1x256xf32>
    %19 = vector.broadcast %17 : vector<1x256xf32> to vector<4x256xf32>
    %20 = arith.mulf %13, %19 : vector<4x256xf32>
    %21 = tpu.iota {dimensions = array<i32: 0>} : vector<4x256xi32>
    %22 = vector.broadcast %8 : vector<1x256xi32> to vector<4x256xi32>
    %23 = arith.cmpi eq, %21, %22 : vector<4x256xi32>
    %24 = arith.extui %23 : vector<4x256xi1> to vector<4x256xi32>
    %25 = arith.sitofp %24 : vector<4x256xi32> to vector<4x256xf32>
    %26 = arith.mulf %20, %25 : vector<4x256xf32>
    %27 = arith.mulf %12, %25 : vector<4x256xf32>
    %cst_10 = arith.constant dense<0.000000e+00> : vector<256xf32>
    %28 = vector.multi_reduction <add>, %27, %cst_10 [0] : vector<4x256xf32> to vector<256xf32>
    %29 = vector.shape_cast %28 : vector<256xf32> to vector<1x256xf32>
    %cst_11 = arith.constant dense<0.000000e+00> : vector<4xf32>
    %30 = vector.multi_reduction <add>, %26, %cst_11 [1] : vector<4x256xf32> to vector<4xf32>
    %31 = vector.shape_cast %30 : vector<4xf32> to vector<4x1xf32>
    %cst_12 = arith.constant dense<0.000000e+00> : vector<4xf32>
    %32 = vector.multi_reduction <add>, %25, %cst_12 [1] : vector<4x256xf32> to vector<4xf32>
    %33 = vector.shape_cast %32 : vector<4xf32> to vector<4x1xf32>
    %cst_13 = arith.constant dense<0.000000e+00> : vector<4xf32>
    %34 = vector.multi_reduction <add>, %20, %cst_13 [1] : vector<4x256xf32> to vector<4xf32>
    %35 = vector.shape_cast %34 : vector<4xf32> to vector<4x1xf32>
    %36 = arith.subf %18, %29 : vector<1x256xf32>
    %cst_14 = arith.constant dense<0.000000e+00> : vector<1xf32>
    %37 = vector.multi_reduction <add>, %36, %cst_14 [1] : vector<1x256xf32> to vector<1xf32>
    %38 = vector.shape_cast %37 : vector<1xf32> to vector<1x1xf32>
    %39 = arith.addf %3, %31 : vector<4x1xf32>
    %40 = arith.addf %3, %33 : vector<4x1xf32>
    %41 = arith.addf %3, %35 : vector<4x1xf32>
    %42 = arith.addf %4, %38 : vector<1x1xf32>
    %43 = tpu.iota {dimensions = array<i32: 1>} : vector<4x4xi32>
    %44 = tpu.iota {dimensions = array<i32: 0>} : vector<4x4xi32>
    %c0_i32_15 = arith.constant 0 : i32
    %45 = vector.broadcast %c0_i32_15 : i32 to vector<4x4xi32>
    %46 = arith.cmpi eq, %43, %45 : vector<4x4xi32>
    %cst_16 = arith.constant 0.000000e+00 : f32
    %47 = vector.shape_cast %39 : vector<4x1xf32> to vector<4x1xf32>
    %48 = vector.broadcast %47 : vector<4x1xf32> to vector<4x4xf32>
    %49 = vector.broadcast %cst_16 : f32 to vector<4x4xf32>
    %50 = arith.select %46, %48, %49 : vector<4x4xi1>, vector<4x4xf32>
    %c1_i32 = arith.constant 1 : i32
    %51 = vector.broadcast %c1_i32 : i32 to vector<4x4xi32>
    %52 = arith.cmpi eq, %43, %51 : vector<4x4xi32>
    %cst_17 = arith.constant 0.000000e+00 : f32
    %53 = vector.shape_cast %40 : vector<4x1xf32> to vector<4x1xf32>
    %54 = vector.broadcast %53 : vector<4x1xf32> to vector<4x4xf32>
    %55 = vector.broadcast %cst_17 : f32 to vector<4x4xf32>
    %56 = arith.select %52, %54, %55 : vector<4x4xi1>, vector<4x4xf32>
    %57 = arith.addf %50, %56 : vector<4x4xf32>
    %c2_i32 = arith.constant 2 : i32
    %58 = vector.broadcast %c2_i32 : i32 to vector<4x4xi32>
    %59 = arith.cmpi eq, %43, %58 : vector<4x4xi32>
    %cst_18 = arith.constant 0.000000e+00 : f32
    %60 = vector.shape_cast %41 : vector<4x1xf32> to vector<4x1xf32>
    %61 = vector.broadcast %60 : vector<4x1xf32> to vector<4x4xf32>
    %62 = vector.broadcast %cst_18 : f32 to vector<4x4xf32>
    %63 = arith.select %59, %61, %62 : vector<4x4xi1>, vector<4x4xf32>
    %64 = arith.addf %57, %63 : vector<4x4xf32>
    %c3_i32 = arith.constant 3 : i32
    %65 = vector.broadcast %c3_i32 : i32 to vector<4x4xi32>
    %66 = arith.cmpi eq, %43, %65 : vector<4x4xi32>
    %c0_i32_19 = arith.constant 0 : i32
    %67 = vector.broadcast %c0_i32_19 : i32 to vector<4x4xi32>
    %68 = arith.cmpi eq, %44, %67 : vector<4x4xi32>
    %69 = arith.andi %66, %68 : vector<4x4xi1>
    %cst_20 = arith.constant 0.000000e+00 : f32
    %70 = vector.shape_cast %42 : vector<1x1xf32> to vector<1x1xf32>
    %71 = vector.broadcast %70 : vector<1x1xf32> to vector<4x4xf32>
    %72 = vector.broadcast %cst_20 : f32 to vector<4x4xf32>
    %73 = arith.select %69, %71, %72 : vector<4x4xi1>, vector<4x4xf32>
    %74 = arith.addf %64, %73 : vector<4x4xf32>
    %c0_21 = arith.constant 0 : index
    %c0_22 = arith.constant 0 : index
    %c0_23 = arith.constant 0 : index
    %c0_24 = arith.constant 0 : index
    %75 = vector.load %arg5[%c0_21, %c0_22, %c0_23, %c0_24] : memref<1x1x4x4xf32, #tpu.memory_space<vmem>>, vector<1x1x4x4xf32>
    %76 = vector.shape_cast %75 : vector<1x1x4x4xf32> to vector<4x4xf32>
    %77 = arith.addf %76, %74 : vector<4x4xf32>
    %c0_25 = arith.constant 0 : index
    %c0_26 = arith.constant 0 : index
    %c0_27 = arith.constant 0 : index
    %c0_28 = arith.constant 0 : index
    %78 = vector.load %arg5[%c0_25, %c0_26, %c0_27, %c0_28] : memref<1x1x4x4xf32, #tpu.memory_space<vmem>>, vector<1x1x4x4xf32>
    %79 = vector.shape_cast %78 : vector<1x1x4x4xf32> to vector<4x4xf32>
    %80 = vector.shape_cast %77 : vector<4x4xf32> to vector<1x1x4x4xf32>
    tpu.vector_store %arg5[%c0_25, %c0_26, %c0_27, %c0_28], %80 {strides = array<i32>} : memref<1x1x4x4xf32, #tpu.memory_space<vmem>>, vector<1x1x4x4xf32>,
    return
  }
  func.func @transform_0(%arg0: i32, %arg1: i32, %arg2: i32) -> (i32, i32, i32) {
    %c1_i32 = arith.constant 1 : i32
    %0 = arith.muli %arg0, %c1_i32 : i32
    %1 = arith.addi %0, %arg2 : i32
    %c0_i32 = arith.constant 0 : i32
    %c0_i32_0 = arith.constant 0 : i32
    return %arg1, %c0_i32, %1 : i32, i32, i32
  }
  func.func @transform_1(%arg0: i32, %arg1: i32, %arg2: i32) -> (i32, i32, i32) {
    %c1_i32 = arith.constant 1 : i32
    %0 = arith.muli %arg0, %c1_i32 : i32
    %1 = arith.addi %0, %arg2 : i32
    %c0_i32 = arith.constant 0 : i32
    %c0_i32_0 = arith.constant 0 : i32
    return %arg1, %c0_i32, %1 : i32, i32, i32
  }
  func.func @transform_2(%arg0: i32, %arg1: i32, %arg2: i32) -> (i32, i32, i32, i32) {
    %c0_i32 = arith.constant 0 : i32
    %c0_i32_0 = arith.constant 0 : i32
    %c0_i32_1 = arith.constant 0 : i32
    return %arg0, %arg1, %c0_i32, %c0_i32_0 : i32, i32, i32, i32
  }
}

</mosaic_0001>

<llo_original>
// kernel: tpu_custom_call.1
$region0: #{tpu_custom_call.1}
  #allocation0 [shape = 'u32[]', space=smem, size = 0x4, offset = 0x4, fixed_abs, tag = 'smem constant byte address 0x4 - core index']
  #allocation1 [shape = 'u32[144,128]{1,0:T(1,128)}', space=vmem, size = 0x12000, scoped, tag = 'internal scratch']
  %s0 = inlined_call_operand.hbm [shape: f32[2,4,256], index: 0, kind: input, shape index: {}]
  %s1 = inlined_call_operand.hbm [shape: s32[2,1,256], index: 1, kind: input, shape index: {}]
  %s2 = inlined_call_operand.hbm [shape: f32[1,2,4,4], index: 2, kind: output, shape index: {}]
  %s3 = sld [smem:[#allocation0]]
  $region53: #{tpu_custom_call.1} parent=0
    _
  %s5 = ssub.s32 1, %s3
  %s6 = scalar_select 0, %s5, %s3
  $region1: #{tpu_custom_call.1} parent=0
    #allocation2 [shape = 'u8[8192]{0}', space=vmem, size = 0x2000, scoped, tag = 'input window, operand 0']
    #allocation3 [shape = 's32[2]{0}', space=sflag, size = 0x8, scoped, tag = 'scoped memory for tpu_custom_call.1']
    #allocation4 [shape = 's32[2]{0}', space=sflag, size = 0x8, scoped, tag = 'scoped memory for tpu_custom_call.1']
    #allocation5 [shape = 'u8[2048]{0}', space=vmem, size = 0x800, scoped, tag = 'input window, operand 1']
    #allocation6 [shape = 's32[2]{0}', space=sflag, size = 0x8, scoped, tag = 'scoped memory for tpu_custom_call.1']
    #allocation7 [shape = 'u8[4096]{0}', space=vmem, size = 0x1000, scoped, tag = 'output window, operand 0']
    %7 = vsyncpa [#allocation3], 0
    %s8 = scalar_lea.sflag [#allocation3], 1
    %9 = vsyncpa %s8, 0
    %10 = vsyncpa [#allocation6], 0
    %s11 = scalar_lea.sflag [#allocation6], 1
    %12 = vsyncpa %s11, 0
    %13 = vsyncpa [#allocation4], 0
    %s14 = scalar_lea.sflag [#allocation4], 1
    %15 = vsyncpa %s14, 0
    loop: start=0, step=1, limit=4
    $region2: #{tpu_custom_call.1} parent=1 // loop_pre_header
      _
    $region3: #{tpu_custom_call.1} parent=1 // loop_header
      %s17 = sphi 0, %s21
      %p18 = scmp.ge.s32.totalorder %s17, 4
      %s24 = sphi 0, %s43
      %s25 = sphi 0, %s39
      %s26 = sphi 0, %s35
      %s27 = sphi 0, %s24
      %s28 = sphi 0, %s25
      %s29 = sphi 0, %s26
      %s30 = sphi 0, %s27
      %s31 = sphi 0, %s28
      %s32 = sphi 0, %s29
      %s50 = sphi 0, %s52
      %s53 = sphi 0, %s50
      %s54 = sphi 0, %s53
      %s70 = sphi 0, %s54
      %s80 = sphi 0, %s82
      %s83 = sphi 0, %s80
      %s84 = sphi 0, %s83
      %s100 = sphi 0, %s84
      %s108 = sphi 0, %s110
      %s111 = sphi 0, %s108
      %s112 = sphi 0, %s111
      %s128 = sphi 0, %s112
    $region4: #{tpu_custom_call.1} parent=1 // loop_header_branch
      %20 = sbr.rel (%p18) target = $region8
    $region5: #{tpu_custom_call.1} parent=1 // loop_body
      %s22 = ssub.s32 %s17, 1
      %s23 = ssub.s32 %s17, 2
      %s33 = sadd.s32 1, %s26
      %p34 = scmp.ge.s32.totalorder %s33, 1
      %s35 = scalar_select %p34, 0, %s33
      %s36 = sadd.s32 1, %s25
      %s37 = scalar_select %p34, %s36, %s25
      %p38 = scmp.ge.s32.totalorder %s37, 2
      %s39 = scalar_select %p38, 0, %s37
      %s40 = sadd.s32 1, %s24
      %s41 = scalar_select %p38, %s40, %s24
      %p42 = scmp.ge.s32.totalorder %s41, 1
      %s43 = scalar_select %p42, 0, %s41
      %s44 = sadd.s32 %s24, %s26
      %s45 = sadd.s32 %s43, %s35
      %s46 = ssub.s32 %s25, %s39
      %s47 = ssub.s32 %s44, %s45
      %s48 = sor.u32 %s46, %s47
      %p49 = scmp.eq.s32.totalorder %s48, 0
      %s51 = sadd.s32 %s50, 1
      %s52 = scalar_select %p49, %s50, %s51
      %p55 = pneg %p49
      %p56 = scmp.eq.s32.totalorder %s17, 1
      %p57 = por %p55, %p56
      %p58 = scmp.ne.s32.totalorder %s50, %s53
      %p59 = scmp.eq.s32.totalorder %s17, 0
      %p60 = por %p58, %p59
      %p61 = scmp.ne.s32.totalorder %s50, %s53
      %p62 = scmp.eq.s32.totalorder %s22, 1
      %p63 = por %p61, %p62
      %p64 = scmp.ne.s32.totalorder %s53, %s54
      %p65 = scmp.eq.s32.totalorder %s22, 0
      %p66 = por %p64, %p65
      %p67 = scmp.ne.s32.totalorder %s53, %s54
      %p68 = scmp.eq.s32.totalorder %s23, 1
      %p69 = por %p67, %p68
      %p71 = scmp.ne.s32.totalorder %s54, %s70
      %p72 = scmp.eq.s32.totalorder %s23, 0
      %p73 = por %p71, %p72
      %s74 = sadd.s32 %s24, %s26
      %s75 = sadd.s32 %s43, %s35
      %s76 = ssub.s32 %s25, %s39
      %s77 = ssub.s32 %s74, %s75
      %s78 = sor.u32 %s76, %s77
      %p79 = scmp.eq.s32.totalorder %s78, 0
      %s81 = sadd.s32 %s80, 1
      %s82 = scalar_select %p79, %s80, %s81
      %p85 = pneg %p79
      %p86 = scmp.eq.s32.totalorder %s17, 1
      %p87 = por %p85, %p86
      %p88 = scmp.ne.s32.totalorder %s80, %s83
      %p89 = scmp.eq.s32.totalorder %s17, 0
      %p90 = por %p88, %p89
      %p91 = scmp.ne.s32.totalorder %s80, %s83
      %p92 = scmp.eq.s32.totalorder %s22, 1
      %p93 = por %p91, %p92
      %p94 = scmp.ne.s32.totalorder %s83, %s84
      %p95 = scmp.eq.s32.totalorder %s22, 0
      %p96 = por %p94, %p95
      %p97 = scmp.ne.s32.totalorder %s83, %s84
      %p98 = scmp.eq.s32.totalorder %s23, 1
      %p99 = por %p97, %p98
      %p101 = scmp.ne.s32.totalorder %s84, %s100
      %p102 = scmp.eq.s32.totalorder %s23, 0
      %p103 = por %p101, %p102
      %s104 = ssub.s32 %s24, %s43
      %s105 = ssub.s32 %s25, %s39
      %s106 = sor.u32 %s104, %s105
      %p107 = scmp.eq.s32.totalorder %s106, 0
      %s109 = sadd.s32 %s108, 1
      %s110 = scalar_select %p107, %s108, %s109
      %p113 = pneg %p107
      %p114 = scmp.eq.s32.totalorder %s17, 1
      %p115 = por %p113, %p114
      %p116 = scmp.ne.s32.totalorder %s108, %s111
      %p117 = scmp.eq.s32.totalorder %s17, 0
      %p118 = por %p116, %p117
      %p119 = scmp.ne.s32.totalorder %s108, %s111
      %p120 = scmp.eq.s32.totalorder %s22, 1
      %p121 = por %p119, %p120
      %p122 = scmp.ne.s32.totalorder %s111, %s112
      %p123 = scmp.eq.s32.totalorder %s22, 0
      %p124 = por %p122, %p123
      %p125 = scmp.ne.s32.totalorder %s111, %s112
      %p126 = scmp.eq.s32.totalorder %s23, 1
      %p127 = por %p125, %p126
      %p129 = scmp.ne.s32.totalorder %s112, %s128
      %p130 = scmp.eq.s32.totalorder %s23, 0
      %p131 = por %p129, %p130
      %p132 = scmp.le.s32.totalorder 1, %s17
      %p133 = scmp.lt.s32.totalorder %s17, 3
      %p134 = pnand %p132, %p133
      %p135 = pneg %p134
      // Predicated region
      $region9: #{tpu_custom_call.1} parent=5 // pred_check
        _
      $region10: #{tpu_custom_call.1} parent=5 // pred_check_branch
        %137 = sbr.rel (%p134) target = $region12
      $region11: #{tpu_custom_call.1} parent=5 // pred_region
        %s138 = ssub.s32 %s17, 1
      $region12: #{tpu_custom_call.1} parent=5 // pred_fallthru
        _
      %p139 = scmp.lt.s32.totalorder %s17, 2
      // Predicated region
      $region13: #{tpu_custom_call.1} parent=5 // pred_check
        %p140 = pneg %p139
      $region14: #{tpu_custom_call.1} parent=5 // pred_check_branch
        %142 = sbr.rel (%p140) target = $region16
      $region15: #{tpu_custom_call.1} parent=5 // pred_region
        // Predicated region
        $region17: #{tpu_custom_call.1} parent=15 // pred_check
          %p143 = pneg %p60
        $region18: #{tpu_custom_call.1} parent=15 // pred_check_branch
          %145 = sbr.rel (%p143) target = $region20
        $region19: #{tpu_custom_call.1} parent=15 // pred_region
          %s146 = sand.u32 %s50, 1
          %s147 = scalar_lea.sflag [#allocation3], %s146
          %s148 = sand.u32 %s50, 1
          %s149 = smul.addr %s148, 8
          %s150 = scalar_lea.vmem [#allocation2], %s149
          %s151 = sadd.s32 %s24, %s26
          %s152 = smul.u32 2, %s151
          %s154 = ssub.s32 128, 128
          %155 = vsyncadd %s147, %s154
          %s156 = smul.addr %s25, 2
          %s157 = sadd.s32 %s152, %s156
          %s158 = smul.addr %s157, 64
          %s159 = scalar_lea.hbm %s0, %s158
          %s161 = sshll.u32 %s150, 4
          %s162 = int_to_ptr.vmem [resolvable:$true] %s161
          %164 = dma.hbm_to_vmem [thread:$0]  %s159, 128, %s162, %s147
        $region20: #{tpu_custom_call.1} parent=15 // pred_fallthru
          _
        // Predicated region
        $region21: #{tpu_custom_call.1} parent=15 // pred_check
          %p165 = pneg %p90
        $region22: #{tpu_custom_call.1} parent=15 // pred_check_branch
          %167 = sbr.rel (%p165) target = $region24
        $region23: #{tpu_custom_call.1} parent=15 // pred_region
          %s168 = sand.u32 %s80, 1
          %s169 = scalar_lea.sflag [#allocation6], %s168
          %s170 = sand.u32 %s80, 1
          %s171 = smul.addr %s170, 2
          %s172 = scalar_lea.vmem [#allocation5], %s171
          %s173 = sadd.s32 %s24, %s26
          %s174 = smul.u32 2, %s173
          %s176 = ssub.s32 32, 32
          %177 = vsyncadd %s169, %s176
          %s178 = smul.addr %s25, 2
          %s179 = sadd.s32 %s174, %s178
          %s180 = smul.addr %s179, 16
          %s181 = scalar_lea.hbm %s1, %s180
          %s183 = sshll.u32 %s172, 4
          %s184 = int_to_ptr.vmem [resolvable:$true] %s183
          %186 = dma.hbm_to_vmem [thread:$0]  %s181, 32, %s184, %s169
        $region24: #{tpu_custom_call.1} parent=15 // pred_fallthru
          _
      $region16: #{tpu_custom_call.1} parent=5 // pred_fallthru
        _
      %p187 = scmp.le.s32.totalorder 1, %s17
      %p188 = scmp.lt.s32.totalorder %s17, 3
      %p189 = pnand %p187, %p188
      %p190 = pneg %p189
      // Predicated region
      $region25: #{tpu_custom_call.1} parent=5 // pred_check
        _
      $region26: #{tpu_custom_call.1} parent=5 // pred_check_branch
        %192 = sbr.rel (%p189) target = $region28
      $region27: #{tpu_custom_call.1} parent=5 // pred_region
        %s193 = ssub.s32 %s17, 1
        %s194 = sand.u32 %s53, 1
        %s195 = scalar_lea.sflag [#allocation3], %s194
        %s196 = sand.u32 %s53, 1
        %s197 = smul.addr %s196, 8
        %s198 = scalar_lea.vmem [#allocation2], %s197
        // Predicated region
        $region29: #{tpu_custom_call.1} parent=27 // pred_check
          %p199 = pneg %p66
        $region30: #{tpu_custom_call.1} parent=27 // pred_check_branch
          %201 = sbr.rel (%p199) target = $region32
        $region31: #{tpu_custom_call.1} parent=27 // pred_region
          %202 = dma.done %s195, 128
        $region32: #{tpu_custom_call.1} parent=27 // pred_fallthru
          _
        %s203 = sand.u32 %s83, 1
        %s204 = scalar_lea.sflag [#allocation6], %s203
        %s205 = sand.u32 %s83, 1
        %s206 = smul.addr %s205, 2
        %s207 = scalar_lea.vmem [#allocation5], %s206
        // Predicated region
        $region33: #{tpu_custom_call.1} parent=27 // pred_check
          %p208 = pneg %p96
        $region34: #{tpu_custom_call.1} parent=27 // pred_check_branch
          %210 = sbr.rel (%p208) target = $region36
        $region35: #{tpu_custom_call.1} parent=27 // pred_region
          %211 = dma.done %s204, 32
        $region36: #{tpu_custom_call.1} parent=27 // pred_fallthru
          _
        %s212 = sand.u32 %s53, 1
        %s213 = scalar_lea.sflag [#allocation3], %s212
        %s214 = sand.u32 %s53, 1
        %s215 = smul.addr %s214, 8
        %s216 = scalar_lea.vmem [#allocation2], %s215
        %p217 = pneg %p66
        %p218 = pneg %p63
        %s219 = sand.u32 %s83, 1
        %s220 = scalar_lea.sflag [#allocation6], %s219
        %s221 = sand.u32 %s83, 1
        %s222 = smul.addr %s221, 2
        %s223 = scalar_lea.vmem [#allocation5], %s222
        %p224 = pneg %p96
        %p225 = pneg %p93
        %p226 = pneg %p124
        %p227 = pneg %p121
        %s228 = sand.u32 %s111, 1
        %s229 = scalar_lea.sflag [#allocation4], %s228
        %s230 = sand.u32 %s111, 1
        %s231 = smul.addr %s230, 4
        %s232 = scalar_lea.vmem [#allocation7], %s231
        %s233 = sadd.s32 %s27, %s29
        %s234 = smul.u32 2, %s233
        %s235 = sadd.s32 %s27, %s29
        %s236 = smul.u32 2, %s235
        %p237 = scmp.eq.s32.totalorder %s29, 0
        // Predicated region
        $region37: #{tpu_custom_call.1} parent=27 // pred_check
          %p238 = pneg %p237
        $region38: #{tpu_custom_call.1} parent=27 // pred_check_branch
          %240 = sbr.rel (%p238) target = $region40
        $region39: #{tpu_custom_call.1} parent=27 // pred_region
          %vm241 = vcmask 27648
          %242 = vst.msk [vmem:[%s232] sm:$0xf] %vm241, 0.0
        $region40: #{tpu_custom_call.1} parent=27 // pred_fallthru
          _
        %v243 = vld [vmem:[%s198] sm:$0xff]
        %v244 = vld [vmem:[%s207] sm:$0x3]
        %v246 = vcombine.high %v243, %v243
        %vm248 = vcmask 1043456
        %v249 = vsel %vm248, %v243, -inf
        %v250 = vrot.slane %v249, 4
        %v251 = vmax.f32 %v249, %v250
        %v252 = vrot.slane %v251, 2
        %v253 = vmax.f32 %v251, %v252
        %v254 = vrot.slane %v253, 1
        %v255 = vmax.f32 %v253, %v254
        %v256 = vsel %vm248, %v246, -inf
        %v257 = vrot.slane %v256, 4
        %v258 = vmax.f32 %v256, %v257
        %v259 = vrot.slane %v258, 2
        %v260 = vmax.f32 %v258, %v259
        %v261 = vrot.slane %v260, 1
        %v262 = vmax.f32 %v260, %v261
        %v265 = vcombine.low %v255, %v262
        %v267 = vsub.f32 %v243, %v265
        %v268 = vmul.f32 %v267, 1.442695
        %v269 = vpow.pop %v268
        %v271 = vcombine.high %v269, %v269
        %v273 = vsel %vm248, %v269, 0.0
        %v274 = vrot.slane %v273, 4
        %v275 = vadd.f32 %v273, %v274
        %v276 = vrot.slane %v275, 2
        %v277 = vadd.f32 %v275, %v276
        %v278 = vrot.slane %v277, 1
        %v279 = vadd.f32 %v277, %v278
        %v280 = vsel %vm248, %v271, 0.0
        %v281 = vrot.slane %v280, 4
        %v282 = vadd.f32 %v280, %v281
        %v283 = vrot.slane %v282, 2
        %v284 = vadd.f32 %v282, %v283
        %v285 = vrot.slane %v284, 1
        %v286 = vadd.f32 %v284, %v285
        %v287 = vrcp.pop %v279
        %v288 = vmul.f32 1.0, %v287
        %v289 = vrcp.pop %v286
        %v290 = vmul.f32 1.0, %v289
        %v291 = vlog2.pop %v279
        %v292 = vmul.f32 %v291, 0.6931472
        %v293 = vlog2.pop %v286
        %v294 = vmul.f32 %v293, 0.6931472
        %v297 = vcombine.low %v288, %v290
        %v299 = vmul.f32 %v269, %v297
        %v300 = vlaneseq
        %v301 = vshrl.u32 %v300, 7
        %v302 = vlaneseq
        %v303 = vshrl.u32 %v302, 7
        %v304 = vsub.s32 0, %v303
        %v305 = vrot.slane %v244, %v304
        %v306 = vlaneseq
        %v307 = vshrl.u32 %v306, 7
        %v308 = vsub.s32 1, %v307
        %v309 = vrot.slane %v244, %v308
        %vm310 = vcmp.eq.s32.totalorder %v301, %v305
        %vm311 = vcmp.eq.s32.totalorder %v301, %v309
        %v312 = vsel %vm310, 1, 0
        %v313 = vsel %vm311, 1, 0
        %v314 = vcvt.s32.f32 %v312
        %v315 = vcvt.s32.f32 %v313
        %v318 = vcombine.low %v314, %v315
        %v320 = vmul.f32 %v299, %v318
        %v321 = vmul.f32 %v267, %v318
        %v323 = vcombine.high %v321, %v321
        %v325 = vsel %vm248, %v321, 0.0
        %v326 = vrot.slane %v325, 4
        %v327 = vadd.f32 %v325, %v326
        %v328 = vrot.slane %v327, 2
        %v329 = vadd.f32 %v327, %v328
        %v330 = vrot.slane %v329, 1
        %v331 = vadd.f32 %v329, %v330
        %v332 = vsel %vm248, %v323, 0.0
        %v333 = vrot.slane %v332, 4
        %v334 = vadd.f32 %v332, %v333
        %v335 = vrot.slane %v334, 2
        %v336 = vadd.f32 %v334, %v335
        %v337 = vrot.slane %v336, 1
        %v338 = vadd.f32 %v336, %v337
        %v340 = vcombine.high %v320, %v320
        %v342 = vsel %vm248, %v320, 0.0
        %v343 = vsel %vm248, %v340, 0.0
        %v344 = vadd.f32 %v342, %v343
        %345 = vadd.xlane.f32.xlu0 %v344
        %v346 = vpop.xlane.xlu0 %345
        %v347 = vsel %vm248, %v314, 0.0
        %v348 = vsel %vm248, %v315, 0.0
        %v349 = vadd.f32 %v347, %v348
        %350 = vadd.xlane.f32.xlu0 %v349
        %v351 = vpop.xlane.xlu0 %350
        %v353 = vcombine.high %v299, %v299
        %v355 = vsel %vm248, %v299, 0.0
        %v356 = vsel %vm248, %v353, 0.0
        %v357 = vadd.f32 %v355, %v356
        %358 = vadd.xlane.f32.xlu0 %v357
        %v359 = vpop.xlane.xlu0 %358
        %v360 = vsub.f32 %v292, %v331
        %v361 = vsub.f32 %v294, %v338
        %v362 = vadd.f32 %v360, %v361
        %363 = vadd.xlane.f32.xlu0 %v362
        %v364 = vpop.xlane.xlu0 %363
        %v365 = vadd.f32 %v346, 0.0
        %v366 = vadd.f32 %v351, 0.0
        %v367 = vadd.f32 %v359, 0.0
        %v368 = vadd.f32 %v364, 0.0
        %v369 = vlaneseq
        %v370 = vand.u32 %v369, 127
        %vm371 = vcmp.eq.s32.totalorder %v370, 0
        %v372 = vsel %vm371, %v365, 0.0
        %vm373 = vcmp.eq.s32.totalorder %v370, 1
        %v374 = vsel %vm373, %v366, 0.0
        %v375 = vadd.f32 %v372, %v374
        %vm376 = vcmp.eq.s32.totalorder %v370, 2
        %v377 = vsel %vm376, %v367, 0.0
        %v378 = vadd.f32 %v375, %v377
        %vm379 = vcmp.eq.s32.totalorder %v370, 3
        %vm380 = vcmp.eq.s32.totalorder %v301, 0
        %vm381 = vmand %vm379, %vm380
        %v382 = vsel %vm381, %v368, 0.0
        %v383 = vadd.f32 %v378, %v382
        %v384 = vld [vmem:[%s232] sm:$0xf]
        %v385 = vadd.f32 %v384, %v383
        %vm386 = vcmask 27648
        %387 = vst.msk [vmem:[%s232] sm:$0xf] %vm386, %v385
        %s388 = sand.u32 %s111, 1
        %s389 = scalar_lea.sflag [#allocation4], %s388
        %s390 = sand.u32 %s111, 1
        %s391 = smul.addr %s390, 4
        %s392 = scalar_lea.vmem [#allocation7], %s391
        // Predicated region
        $region41: #{tpu_custom_call.1} parent=27 // pred_check
          %p393 = pneg %p121
        $region42: #{tpu_custom_call.1} parent=27 // pred_check_branch
          %395 = sbr.rel (%p393) target = $region44
        $region43: #{tpu_custom_call.1} parent=27 // pred_region
          %s397 = ssub.s32 64, 64
          %398 = vsyncadd %s389, %s397
          %s399 = smul.addr %s27, 2
          %s400 = sadd.s32 %s28, %s399
          %s401 = smul.addr %s400, 64
          %s402 = scalar_lea.hbm %s2, %s401
          %s404 = sshll.u32 %s392, 4
          %s405 = int_to_ptr.vmem [resolvable:$true] %s404
          %407 = dma.vmem_to_hbm [thread:$0]  %s405, 64, %s402, %s389
        $region44: #{tpu_custom_call.1} parent=27 // pred_fallthru
          _
      $region28: #{tpu_custom_call.1} parent=5 // pred_fallthru
        _
      %p408 = scmp.le.s32.totalorder 2, %s17
      // Predicated region
      $region45: #{tpu_custom_call.1} parent=5 // pred_check
        %p409 = pneg %p408
      $region46: #{tpu_custom_call.1} parent=5 // pred_check_branch
        %411 = sbr.rel (%p409) target = $region48
      $region47: #{tpu_custom_call.1} parent=5 // pred_region
        %s412 = ssub.s32 %s17, 2
        // Predicated region
        $region49: #{tpu_custom_call.1} parent=47 // pred_check
          %p413 = pneg %p127
        $region50: #{tpu_custom_call.1} parent=47 // pred_check_branch
          %415 = sbr.rel (%p413) target = $region52
        $region51: #{tpu_custom_call.1} parent=47 // pred_region
          %s416 = sand.u32 %s112, 1
          %s417 = scalar_lea.sflag [#allocation4], %s416
          %s418 = sand.u32 %s112, 1
          %s419 = smul.addr %s418, 4
          %s420 = scalar_lea.vmem [#allocation7], %s419
          %421 = dma.done %s417, 64
        $region52: #{tpu_custom_call.1} parent=47 // pred_fallthru
          _
      $region48: #{tpu_custom_call.1} parent=5 // pred_fallthru
        _
    $region6: #{tpu_custom_call.1} parent=1 // loop_footer
      %s21 = sadd.s32 1, %s17
    $region7: #{tpu_custom_call.1} parent=1 // loop_footer_branch
      %16 = sbr.rel target = $region3
    $region8: #{tpu_custom_call.1} parent=1 // loop_exit
      _
    %422 = vsyncpa [#allocation3], 1
    %s423 = scalar_lea.sflag [#allocation3], 1
    %424 = vsyncpa %s423, 1
    %425 = vsyncpa [#allocation6], 1
    %s426 = scalar_lea.sflag [#allocation6], 1
    %427 = vsyncpa %s426, 1
    %428 = vsyncpa [#allocation4], 1
    %s429 = scalar_lea.sflag [#allocation4], 1
    %430 = vsyncpa %s429, 1

</llo_original>
